<compile_context>
chip_gen: v6e
topology: v6e:2x2x1
jax: 0.10.0
libtpu: 0.0.40
codegen_flags: <defaults>
</compile_context>

<pallas_src>
import functools
import math

import jax
import jax.numpy as jnp
from jax.experimental import pallas as pl
from jax.experimental.pallas import tpu as pltpu


def _round_up(x: int, m: int) -> int:
    return ((x + m - 1) // m) * m


def _cdiv(a: int, b: int) -> int:
    return (a + b - 1) // b


_SMALL_N_MAX = 8                 # out_dim <= this -> VPU/XLU GEMV path
_SMALL_PROBLEM_FLOPS = 4 << 20   # below this, a fused XLA GEMV beats the kernel


# --------------------------------------------------------------------------
# MXU path kernel (out_dim > _SMALL_N_MAX)
# --------------------------------------------------------------------------
def _matmul_kernel(x_ref, w_ref, b_ref, o_ref, acc_ref, *, in_dim, tk, mask_k,
                   compute_dtype):
    # x_ref: (tm, tk), w_ref: (tk, tn), b_ref: (1, tn), o_ref/acc_ref: (tm, tn)
    k = pl.program_id(2)

    @pl.when(k == 0)
    def _init():
        acc_ref[...] = jnp.zeros_like(acc_ref)

    x = x_ref[...]
    w = w_ref[...]
    if mask_k:
        # Zero the ragged K tail: out-of-bounds data in the last (partial) K
        # block is unspecified and would otherwise pollute the accumulator.
        col = k * tk + jax.lax.broadcasted_iota(jnp.int32, (1, tk), 1)
        x = jnp.where(col < in_dim, x, 0.0)
        row = k * tk + jax.lax.broadcasted_iota(jnp.int32, (tk, 1), 0)
        w = jnp.where(row < in_dim, w, 0.0)
    if compute_dtype is not None:
        x = x.astype(compute_dtype)
        w = w.astype(compute_dtype)

    acc_ref[...] += jnp.dot(x, w, preferred_element_type=jnp.float32)

    @pl.when(k == pl.num_programs(2) - 1)
    def _finalize():
        out = acc_ref[...] + b_ref[...].astype(jnp.float32)
        o_ref[...] = out.astype(o_ref.dtype)


# --------------------------------------------------------------------------
# Small-N (GEMV-like) kernel: VPU multiply + XLU lane reduction
# --------------------------------------------------------------------------
def _gemv_kernel(x_ref, w_ref, b_ref, o_ref, acc_ref, *, in_dim, tk, mask_k,
                 out_dim):
    # x_ref: (tm, tk), w_ref: (out_dim, tk)  [W passed transposed: (N, K)],
    # b_ref: (1, out_dim), o_ref/acc_ref: (tm, out_dim)
    k = pl.program_id(1)

    @pl.when(k == 0)
    def _init():
        acc_ref[...] = jnp.zeros_like(acc_ref)

    x = x_ref[...].astype(jnp.float32)
    w = w_ref[...].astype(jnp.float32)
    if mask_k:
        col = k * tk + jax.lax.broadcasted_iota(jnp.int32, (1, tk), 1)
        valid = col < in_dim
        x = jnp.where(valid, x, 0.0)
        w = jnp.where(valid, w, 0.0)

    # out_dim is tiny (<= _SMALL_N_MAX), so this static Python loop is short.
    cols = [jnp.sum(x * w[n:n + 1, :], axis=-1, keepdims=True)
            for n in range(out_dim)]
    acc_ref[...] += cols[0] if out_dim == 1 else jnp.concatenate(cols, axis=-1)

    @pl.when(k == pl.num_programs(1) - 1)
    def _finalize():
        out = acc_ref[...] + b_ref[...].astype(jnp.float32)
        o_ref[...] = out.astype(o_ref.dtype)


# --------------------------------------------------------------------------
# Wrapper helpers
# --------------------------------------------------------------------------
def _derive_k_tile(in_dim, tk_default):
    """Return (tk, mask_k). tk is either a multiple of 128 or == in_dim."""
    if in_dim <= tk_default:
        return in_dim, False            # single full-K block, no masking needed
    return tk_default, (in_dim % tk_default != 0)


def _split_for_two_cores(m, tm, n_parallel_blocks):
    # v7x shards "parallel" grid axes over 2 TensorCores; make sure small
    # problems expose at least 2 parallel blocks (costs nothing elsewhere).
    if n_parallel_blocks == 1 and m > 8:
        tm = _round_up(_cdiv(m, 2), 8)
    return tm


def _vmem_limit(footprint_bytes):
    return int(min(56 << 20, max(32 << 20, 2 * footprint_bytes + (4 << 20))))


def _gemv_forward(x2d, weight, bias, m, in_dim, out_dim, tm, tk):
    dtype = x2d.dtype
    tk, mask_k = _derive_k_tile(in_dim, tk)
    tm = min(tm, _round_up(m, 8))
    tm = _split_for_two_cores(m, tm, _cdiv(m, tm))
    grid = (_cdiv(m, tm), _cdiv(in_dim, tk))

    # (out_dim, in_dim): for out_dim == 1 this is just a (free) reshape; for
    # small out_dim it is a tiny transpose, so K lands on the lane axis and
    # broadcasts directly against the x tile inside the kernel.
    w_t = weight.T
    b2d = bias.reshape(1, out_dim)

    x_bytes = m * in_dim * dtype.itemsize
    w_bytes = in_dim * out_dim * weight.dtype.itemsize
    y_bytes = m * out_dim * dtype.itemsize
    cost = pl.CostEstimate(
        flops=2 * m * in_dim * out_dim,
        transcendentals=0,
        bytes_accessed=x_bytes + grid[0] * w_bytes + y_bytes
        + grid[0] * out_dim * bias.dtype.itemsize,
    )

    footprint = (2 * tm * tk * dtype.itemsize            # x double-buffer
                 + 2 * out_dim * tk * weight.dtype.itemsize
                 + 2 * tm * out_dim * dtype.itemsize      # out double-buffer
                 + tm * out_dim * 4                       # f32 accumulator
                 + 2 * out_dim * bias.dtype.itemsize)

    kernel = functools.partial(_gemv_kernel, in_dim=in_dim, tk=tk,
                               mask_k=mask_k, out_dim=out_dim)
    return pl.pallas_call(
        kernel,
        out_shape=jax.ShapeDtypeStruct((m, out_dim), dtype),
        grid_spec=pltpu.PrefetchScalarGridSpec(
            num_scalar_prefetch=0,
            grid=grid,
            in_specs=[
                pl.BlockSpec((tm, tk), lambda i, k: (i, k)),
                pl.BlockSpec((out_dim, tk), lambda i, k: (0, k)),
                pl.BlockSpec((1, out_dim), lambda i, k: (0, 0)),
            ],
            out_specs=pl.BlockSpec((tm, out_dim), lambda i, k: (i, 0)),
            scratch_shapes=[pltpu.VMEM((tm, out_dim), jnp.float32)],
        ),
        compiler_params=pltpu.CompilerParams(
            dimension_semantics=("parallel", "arbitrary"),
            vmem_limit_bytes=_vmem_limit(footprint),
        ),
        cost_estimate=cost,
    )(x2d, w_t, b2d)


def _matmul_forward(x2d, weight, bias, m, in_dim, out_dim, tm, tn, tk,
                    compute_dtype):
    dtype = x2d.dtype
    tk, mask_k = _derive_k_tile(in_dim, tk)
    tn = out_dim if out_dim <= tn else tn       # either == full N, or 128-mult
    tm = min(tm, _round_up(m, 8))
    grid_m, grid_n = _cdiv(m, tm), _cdiv(out_dim, tn)
    tm = _split_for_two_cores(m, tm, grid_m * grid_n)
    grid_m = _cdiv(m, tm)
    grid = (grid_m, grid_n, _cdiv(in_dim, tk))

    b2d = bias.reshape(1, out_dim)

    x_bytes = m * in_dim * dtype.itemsize
    w_bytes = in_dim * out_dim * weight.dtype.itemsize
    y_bytes = m * out_dim * dtype.itemsize
    cost = pl.CostEstimate(
        flops=2 * m * in_dim * out_dim,
        transcendentals=0,
        bytes_accessed=grid_n * x_bytes + grid_m * w_bytes + y_bytes
        + grid_m * out_dim * bias.dtype.itemsize,
    )

    footprint = (2 * tm * tk * dtype.itemsize
                 + 2 * tk * tn * weight.dtype.itemsize
                 + 2 * tm * tn * dtype.itemsize
                 + tm * tn * 4
                 + 2 * tn * bias.dtype.itemsize)

    kernel = functools.partial(_matmul_kernel, in_dim=in_dim, tk=tk,
                               mask_k=mask_k, compute_dtype=compute_dtype)
    return pl.pallas_call(
        kernel,
        out_shape=jax.ShapeDtypeStruct((m, out_dim), dtype),
        grid_spec=pltpu.PrefetchScalarGridSpec(
            num_scalar_prefetch=0,
            grid=grid,
            in_specs=[
                pl.BlockSpec((tm, tk), lambda i, j, k: (i, k)),
                pl.BlockSpec((tk, tn), lambda i, j, k: (k, j)),
                pl.BlockSpec((1, tn), lambda i, j, k: (0, j)),
            ],
            out_specs=pl.BlockSpec((tm, tn), lambda i, j, k: (i, j)),
            scratch_shapes=[pltpu.VMEM((tm, tn), jnp.float32)],
        ),
        compiler_params=pltpu.CompilerParams(
            dimension_semantics=("parallel", "parallel", "arbitrary"),
            vmem_limit_bytes=_vmem_limit(footprint),
        ),
        cost_estimate=cost,
    )(x2d, weight, b2d)


@functools.partial(
    jax.jit,
    static_argnames=("tm", "tn", "tk", "force_pallas", "compute_dtype"))
def mlp_output_forward(x, weight, bias, *, tm=256, tn=256, tk=512,
                       force_pallas=False, compute_dtype=None):
    """Pallas equivalent of MLP_output.forward (y = x @ W^T + b in PyTorch terms).

    x:      [..., input_dim]
    weight: [input_dim, output_dim]   (transposed vs. PyTorch's [out, in])
    bias:   [output_dim]
    compute_dtype: e.g. jnp.bfloat16 to cast matmul operands (f32 accumulate).
    Tile defaults fit all of v5e / v6e / v7x; bump tm/tn/tk for large problems
    on v5e/v6e (128 MiB VMEM) if desired.
    """
    in_dim, out_dim = weight.shape
    lead = x.shape[:-1]
    m = int(math.prod(lead)) if lead else 1
    x2d = x.reshape(m, in_dim)

    # Tiny problems: launch + pipeline overhead dominates; let XLA fuse a GEMV.
    if not force_pallas and 2 * m * in_dim * out_dim < _SMALL_PROBLEM_FLOPS:
        y2d = x2d @ weight + bias
        return y2d.reshape(*lead, out_dim)

    assert tm % 8 == 0 and tn % 128 == 0 and tk % 128 == 0

    if out_dim <= _SMALL_N_MAX:
        y2d = _gemv_forward(x2d, weight, bias, m, in_dim, out_dim, tm, tk)
    else:
        y2d = _matmul_forward(x2d, weight, bias, m, in_dim, out_dim, tm, tn,
                              tk, compute_dtype)
    return y2d.reshape(*lead, out_dim)


def init_mlp_output_params(key, input_dim, output_dim=1, dtype=jnp.float32):
    """nn.Linear default init: U(-1/sqrt(in), 1/sqrt(in)); weight as [in, out]."""
    kw, kb = jax.random.split(key)
    bound = 1.0 / math.sqrt(input_dim)
    weight = jax.random.uniform(kw, (input_dim, output_dim), dtype=dtype,
                                minval=-bound, maxval=bound)
    bias = jax.random.uniform(kb, (output_dim,), dtype=dtype,
                              minval=-bound, maxval=bound)
    return weight, bias


if __name__ == "__main__":
    key = jax.random.PRNGKey(0)
    keys = jax.random.split(key, 6)

    def check(x, w, b, y, atol):
        y_ref = x @ w + b
        assert y.shape == y_ref.shape
        err = float(jnp.max(jnp.abs(y - y_ref)))
        assert jnp.allclose(y, y_ref, atol=atol, rtol=atol), err

    # 1) Typical head shape (output_dim=1): small-N VPU/XLU path, single K block.
    x1 = jax.random.normal(keys[0], (2, 8, 32), dtype=jnp.float32)
    w1, b1 = init_mlp_output_params(keys[1], 32, 1)
    y1 = mlp_output_forward(x1, w1, b1, force_pallas=True)
    jax.block_until_ready(y1)
    check(x1, w1, b1, y1, 1e-5)

    # 2) Multi-step K reduction with a ragged, in-kernel-masked K tail.
    x2 = jax.random.normal(keys[2], (2, 8, 1100), dtype=jnp.float32)
    w2, b2 = init_mlp_output_params(keys[3], 1100, 1)
    y2 = mlp_output_forward(x2, w2, b2, force_pallas=True)
    jax.block_until_ready(y2)
    check(x2, w2, b2, y2, 1e-4)

    # 3) MXU path: out_dim=128, ragged K tail, two-core M split (grid_m = 2).
    x3 = jax.random.normal(keys[4], (2, 8, 600), dtype=jnp.float32)
    w3, b3 = init_mlp_output_params(keys[5], 600, 128)
    y3 = mlp_output_forward(x3, w3, b3, force_pallas=True)
    jax.block_until_ready(y3)
    check(x3, w3, b3, y3, 1e-4)

    # 4) Small-problem fallback (no pallas_call).
    y4 = mlp_output_forward(x1, w1, b1)
    jax.block_until_ready(y4)
    check(x1, w1, b1, y4, 1e-5)

    print("KERNEL_OK")
</pallas_src>

<mosaic_0001>
module attributes {stable_mosaic.version = 11 : i64} {
  func.func @_gemv_kernel(%arg0: i32, %arg1: i32, %arg2: memref<8x32xf32, #tpu.memory_space<vmem>>, %arg3: memref<1x32xf32, #tpu.memory_space<vmem>>, %arg4: memref<1x1xf32, #tpu.memory_space<vmem>>, %arg5: memref<8x1xf32, #tpu.memory_space<vmem>>, %arg6: memref<8x1xf32, #tpu.memory_space<vmem>>) attributes {dimension_semantics = [#tpu.dimension_semantics<parallel>, #tpu.dimension_semantics<arbitrary>], iteration_bounds = array<i64: 2, 1>, scalar_prefetch = 0 : i64, scratch_operands = 1 : i64, tpu.core_type = #tpu.core_type<tc>, window_params = [{transform_indices = @transform_0, window_bounds = array<i64: 8, 32>}, {transform_indices = @transform_1, window_bounds = array<i64: 1, 32>}, {pipeline_mode = #tpu.pipeline_mode<synchronous>, transform_indices = @transform_2, window_bounds = array<i64: 1, 1>}, {transform_indices = @transform_3, window_bounds = array<i64: 8, 1>}]} {
    %c0_i32 = arith.constant 0 : i32
    %0 = arith.cmpi eq, %arg1, %c0_i32 : i32
    %1 = arith.extui %0 : i1 to i32
    %c0_i32_0 = arith.constant 0 : i32
    %2 = arith.cmpi ne, %1, %c0_i32_0 : i32
    scf.if %2 {
      %cst_10 = arith.constant 0.000000e+00 : f32
      %15 = vector.broadcast %cst_10 : f32 to vector<8x1xf32>
      %c0_11 = arith.constant 0 : index
      %c0_12 = arith.constant 0 : index
      %16 = vector.load %arg6[%c0_11, %c0_12] : memref<8x1xf32, #tpu.memory_space<vmem>>, vector<8x1xf32>
      tpu.vector_store %arg6[%c0_11, %c0_12], %15 {strides = array<i32>} : memref<8x1xf32, #tpu.memory_space<vmem>>, vector<8x1xf32>,
    } else {
    }
    %c0 = arith.constant 0 : index
    %c0_1 = arith.constant 0 : index
    %3 = vector.load %arg2[%c0, %c0_1] : memref<8x32xf32, #tpu.memory_space<vmem>>, vector<8x32xf32>
    %c0_2 = arith.constant 0 : index
    %c0_3 = arith.constant 0 : index
    %4 = vector.load %arg3[%c0_2, %c0_3] : memref<1x32xf32, #tpu.memory_space<vmem>>, vector<1x32xf32>
    %5 = vector.broadcast %4 : vector<1x32xf32> to vector<8x32xf32>
    %6 = arith.mulf %3, %5 : vector<8x32xf32>
    %cst = arith.constant dense<0.000000e+00> : vector<8xf32>
    %7 = vector.multi_reduction <add>, %6, %cst [1] : vector<8x32xf32> to vector<8xf32>
    %8 = vector.shape_cast %7 : vector<8xf32> to vector<8x1xf32>
    %c0_4 = arith.constant 0 : index
    %c0_5 = arith.constant 0 : index
    %9 = vector.load %arg6[%c0_4, %c0_5] : memref<8x1xf32, #tpu.memory_space<vmem>>, vector<8x1xf32>
    %10 = arith.addf %9, %8 : vector<8x1xf32>
    %c0_6 = arith.constant 0 : index
    %c0_7 = arith.constant 0 : index
    %11 = vector.load %arg6[%c0_6, %c0_7] : memref<8x1xf32, #tpu.memory_space<vmem>>, vector<8x1xf32>
    tpu.vector_store %arg6[%c0_6, %c0_7], %10 {strides = array<i32>} : memref<8x1xf32, #tpu.memory_space<vmem>>, vector<8x1xf32>,
    %c0_i32_8 = arith.constant 0 : i32
    %12 = arith.cmpi eq, %arg1, %c0_i32_8 : i32
    %13 = arith.extui %12 : i1 to i32
    %c0_i32_9 = arith.constant 0 : i32
    %14 = arith.cmpi ne, %13, %c0_i32_9 : i32
    scf.if %14 {
      %c0_10 = arith.constant 0 : index
      %c0_11 = arith.constant 0 : index
      %15 = vector.load %arg6[%c0_10, %c0_11] : memref<8x1xf32, #tpu.memory_space<vmem>>, vector<8x1xf32>
      %c0_12 = arith.constant 0 : index
      %c0_13 = arith.constant 0 : index
      %16 = vector.load %arg4[%c0_12, %c0_13] : memref<1x1xf32, #tpu.memory_space<vmem>>, vector<1x1xf32>
      %17 = vector.broadcast %16 : vector<1x1xf32> to vector<8x1xf32>
      %18 = arith.addf %15, %17 : vector<8x1xf32>
      %c0_14 = arith.constant 0 : index
      %c0_15 = arith.constant 0 : index
      %19 = vector.load %arg5[%c0_14, %c0_15] : memref<8x1xf32, #tpu.memory_space<vmem>>, vector<8x1xf32>
      tpu.vector_store %arg5[%c0_14, %c0_15], %18 {strides = array<i32>} : memref<8x1xf32, #tpu.memory_space<vmem>>, vector<8x1xf32>,
    } else {
    }
    return
  }
  func.func @transform_0(%arg0: i32, %arg1: i32) -> (i32, i32) {
    %c0_i32 = arith.constant 0 : i32
    return %arg0, %arg1 : i32, i32
  }
  func.func @transform_1(%arg0: i32, %arg1: i32) -> (i32, i32) {
    %c0_i32 = arith.constant 0 : i32
    %c0_i32_0 = arith.constant 0 : i32
    return %c0_i32, %arg1 : i32, i32
  }
  func.func @transform_2(%arg0: i32, %arg1: i32) -> (i32, i32) {
    %c0_i32 = arith.constant 0 : i32
    %c0_i32_0 = arith.constant 0 : i32
    %c0_i32_1 = arith.constant 0 : i32
    return %c0_i32, %c0_i32_0 : i32, i32
  }
  func.func @transform_3(%arg0: i32, %arg1: i32) -> (i32, i32) {
    %c0_i32 = arith.constant 0 : i32
    %c0_i32_0 = arith.constant 0 : i32
    return %arg0, %c0_i32 : i32, i32
  }
}

</mosaic_0001>

<llo_original>
// kernel: mlp_output_forward.1
$region0: #{mlp_output_forward.1}
  #allocation0 [shape = 'u32[]', space=smem, size = 0x4, offset = 0x4, fixed_abs, tag = 'smem constant byte address 0x4 - core index']
  #allocation1 [shape = 'u32[144,128]{1,0:T(1,128)}', space=vmem, size = 0x12000, scoped, tag = 'internal scratch']
  #allocation2 [shape = 'f32[8,1]{1,0:T(8,128)}', space=vmem, size = 0x1000, scoped, tag = 'scratch operand']
  #allocation3 [shape = 'f32[1,1]{1,0:T(1,128)S(1)}', space=vmem, size = 0x200, scoped, tag = 'scoped memory for mlp_output_forward.1']
  %s0 = inlined_call_operand.hbm [shape: f32[16,32], index: 0, kind: input, shape index: {}]
  %s1 = inlined_call_operand.vmem [shape: f32[1,32], index: 1, kind: input, shape index: {}]
  %s2 = inlined_call_operand.<no memory space> [shape: f32[1,1], index: 2, kind: input, shape index: {}]
  %s3 = inlined_call_operand.vmem [shape: f32[16,1], index: 3, kind: output, shape index: {}]
  %s4 = sld [smem:[#allocation0]]
  $region57: #{mlp_output_forward.1} parent=0
    _
  %s6 = ssub.s32 1, %s4
  %s7 = scalar_select 0, %s6, %s4
  %v8 = vstv %s2
  %9 = vst [vmem:[#allocation3] sm:$0x1] %v8
  $region1: #{mlp_output_forward.1} parent=0
    #allocation4 [shape = 'u8[8192]{0}', space=vmem, size = 0x2000, scoped, tag = 'input window, operand 0']
    #allocation5 [shape = 's32[2]{0}', space=sflag, size = 0x8, scoped, tag = 'scoped memory for mlp_output_forward.1']
    %10 = vsyncpa [#allocation5], 0
    %s11 = scalar_lea.sflag [#allocation5], 1
    %12 = vsyncpa %s11, 0
    loop: start=0, step=1, limit=4
    $region2: #{mlp_output_forward.1} parent=1 // loop_pre_header
      _
    $region3: #{mlp_output_forward.1} parent=1 // loop_header
      %s14 = sphi 0, %s18
      %p15 = scmp.ge.s32.totalorder %s14, 4
      %s21 = sphi 0, %s33
      %s22 = sphi 0, %s29
      %s23 = sphi 0, %s21
      %s24 = sphi 0, %s22
      %s25 = sphi 0, %s23
      %s26 = sphi 0, %s24
      %s38 = sphi 0, %s40
      %s41 = sphi 0, %s38
      %s42 = sphi 0, %s41
      %s58 = sphi 0, %s42
      %s64 = sphi 0, %s66
      %s67 = sphi 0, %s64
      %s68 = sphi 0, %s67
      %s84 = sphi 0, %s68
      %s88 = sphi 0, %s88
      %s90 = sphi 0, %s88
      %s91 = sphi 0, %s90
      %s105 = sphi 0, %s91
      %s111 = sphi 0, %s113
      %s114 = sphi 0, %s111
      %s115 = sphi 0, %s114
      %s131 = sphi 0, %s115
    $region4: #{mlp_output_forward.1} parent=1 // loop_header_branch
      %17 = sbr.rel (%p15) target = $region8
    $region5: #{mlp_output_forward.1} parent=1 // loop_body
      %s19 = ssub.s32 %s14, 1
      %s20 = ssub.s32 %s14, 2
      %s27 = sadd.s32 1, %s22
      %p28 = scmp.ge.s32.totalorder %s27, 1
      %s29 = scalar_select %p28, 0, %s27
      %s30 = sadd.s32 1, %s21
      %s31 = scalar_select %p28, %s30, %s21
      %p32 = scmp.ge.s32.totalorder %s31, 2
      %s33 = scalar_select %p32, 0, %s31
      %s34 = ssub.s32 %s21, %s33
      %s35 = ssub.s32 %s22, %s29
      %s36 = sor.u32 %s34, %s35
      %p37 = scmp.eq.s32.totalorder %s36, 0
      %s39 = sadd.s32 %s38, 1
      %s40 = scalar_select %p37, %s38, %s39
      %p43 = pneg %p37
      %p44 = scmp.eq.s32.totalorder %s14, 1
      %p45 = por %p43, %p44
      %p46 = scmp.ne.s32.totalorder %s38, %s41
      %p47 = scmp.eq.s32.totalorder %s14, 0
      %p48 = por %p46, %p47
      %p49 = scmp.ne.s32.totalorder %s38, %s41
      %p50 = scmp.eq.s32.totalorder %s19, 1
      %p51 = por %p49, %p50
      %p52 = scmp.ne.s32.totalorder %s41, %s42
      %p53 = scmp.eq.s32.totalorder %s19, 0
      %p54 = por %p52, %p53
      %p55 = scmp.ne.s32.totalorder %s41, %s42
      %p56 = scmp.eq.s32.totalorder %s20, 1
      %p57 = por %p55, %p56
      %p59 = scmp.ne.s32.totalorder %s42, %s58
      %p60 = scmp.eq.s32.totalorder %s20, 0
      %p61 = por %p59, %p60
      %s62 = ssub.s32 %s22, %s29
      %p63 = scmp.eq.s32.totalorder %s62, 0
      %s65 = sadd.s32 %s64, 1
      %s66 = scalar_select %p63, %s64, %s65
      %p69 = pneg %p63
      %p70 = scmp.eq.s32.totalorder %s14, 1
      %p71 = por %p69, %p70
      %p72 = scmp.ne.s32.totalorder %s64, %s67
      %p73 = scmp.eq.s32.totalorder %s14, 0
      %p74 = por %p72, %p73
      %p75 = scmp.ne.s32.totalorder %s64, %s67
      %p76 = scmp.eq.s32.totalorder %s19, 1
      %p77 = por %p75, %p76
      %p78 = scmp.ne.s32.totalorder %s67, %s68
      %p79 = scmp.eq.s32.totalorder %s19, 0
      %p80 = por %p78, %p79
      %p81 = scmp.ne.s32.totalorder %s67, %s68
      %p82 = scmp.eq.s32.totalorder %s20, 1
      %p83 = por %p81, %p82
      %p85 = scmp.ne.s32.totalorder %s68, %s84
      %p86 = scmp.eq.s32.totalorder %s20, 0
      %p87 = por %p85, %p86
      %s89 = sadd.s32 %s88, 1
      %p92 = scmp.eq.s32.totalorder %s14, 1
      %p93 = scmp.ne.s32.totalorder %s88, %s90
      %p94 = scmp.eq.s32.totalorder %s14, 0
      %p95 = por %p93, %p94
      %p96 = scmp.ne.s32.totalorder %s88, %s90
      %p97 = scmp.eq.s32.totalorder %s19, 1
      %p98 = por %p96, %p97
      %p99 = scmp.ne.s32.totalorder %s90, %s91
      %p100 = scmp.eq.s32.totalorder %s19, 0
      %p101 = por %p99, %p100
      %p102 = scmp.ne.s32.totalorder %s90, %s91
      %p103 = scmp.eq.s32.totalorder %s20, 1
      %p104 = por %p102, %p103
      %p106 = scmp.ne.s32.totalorder %s91, %s105
      %p107 = scmp.eq.s32.totalorder %s20, 0
      %p108 = por %p106, %p107
      %s109 = ssub.s32 %s21, %s33
      %p110 = scmp.eq.s32.totalorder %s109, 0
      %s112 = sadd.s32 %s111, 1
      %s113 = scalar_select %p110, %s111, %s112
      %p116 = pneg %p110
      %p117 = scmp.eq.s32.totalorder %s14, 1
      %p118 = por %p116, %p117
      %p119 = scmp.ne.s32.totalorder %s111, %s114
      %p120 = scmp.eq.s32.totalorder %s14, 0
      %p121 = por %p119, %p120
      %p122 = scmp.ne.s32.totalorder %s111, %s114
      %p123 = scmp.eq.s32.totalorder %s19, 1
      %p124 = por %p122, %p123
      %p125 = scmp.ne.s32.totalorder %s114, %s115
      %p126 = scmp.eq.s32.totalorder %s19, 0
      %p127 = por %p125, %p126
      %p128 = scmp.ne.s32.totalorder %s114, %s115
      %p129 = scmp.eq.s32.totalorder %s20, 1
      %p130 = por %p128, %p129
      %p132 = scmp.ne.s32.totalorder %s115, %s131
      %p133 = scmp.eq.s32.totalorder %s20, 0
      %p134 = por %p132, %p133
      %p135 = scmp.le.s32.totalorder 1, %s14
      %p136 = scmp.lt.s32.totalorder %s14, 3
      %p137 = pnand %p135, %p136
      %p138 = pneg %p137
      // Predicated region
      $region9: #{mlp_output_forward.1} parent=5 // pred_check
        _
      $region10: #{mlp_output_forward.1} parent=5 // pred_check_branch
        %140 = sbr.rel (%p137) target = $region12
      $region11: #{mlp_output_forward.1} parent=5 // pred_region
        %s141 = ssub.s32 %s14, 1
        // Predicated region
        $region13: #{mlp_output_forward.1} parent=11 // pred_check
          %p142 = pneg %p80
        $region14: #{mlp_output_forward.1} parent=11 // pred_check_branch
          %144 = sbr.rel (%p142) target = $region16
        $region15: #{mlp_output_forward.1} parent=11 // pred_region
          %p145 = scmp.lt.s32.totalorder %s24, 0
          %s146 = scalar_select %p145, %s24, 0
          %s147 = scalar_lea.vmem %s1, %s146
        $region16: #{mlp_output_forward.1} parent=11 // pred_fallthru
          _
        // Predicated region
        $region17: #{mlp_output_forward.1} parent=11 // pred_check
          %p148 = pneg %p101
        $region18: #{mlp_output_forward.1} parent=11 // pred_check_branch
          %150 = sbr.rel (%p148) target = $region20
        $region19: #{mlp_output_forward.1} parent=11 // pred_region
          _
        $region20: #{mlp_output_forward.1} parent=11 // pred_fallthru
          _
      $region12: #{mlp_output_forward.1} parent=5 // pred_fallthru
        _
      %p151 = scmp.lt.s32.totalorder %s14, 2
      // Predicated region
      $region21: #{mlp_output_forward.1} parent=5 // pred_check
        %p152 = pneg %p151
      $region22: #{mlp_output_forward.1} parent=5 // pred_check_branch
        %154 = sbr.rel (%p152) target = $region24
      $region23: #{mlp_output_forward.1} parent=5 // pred_region
        // Predicated region
        $region25: #{mlp_output_forward.1} parent=23 // pred_check
          %p155 = pneg %p48
        $region26: #{mlp_output_forward.1} parent=23 // pred_check_branch
          %157 = sbr.rel (%p155) target = $region28
        $region27: #{mlp_output_forward.1} parent=23 // pred_region
          %s158 = sand.u32 %s38, 1
          %s159 = scalar_lea.sflag [#allocation5], %s158
          %s160 = sand.u32 %s38, 1
          %s161 = smul.addr %s160, 8
          %s162 = scalar_lea.vmem [#allocation4], %s161
          %s164 = ssub.s32 128, 128
          %165 = vsyncadd %s159, %s164
          %s166 = sadd.s32 %s22, %s21
          %s167 = smul.addr %s166, 128
          %s168 = scalar_lea.hbm %s0, %s167
          %s170 = sshll.u32 %s162, 4
          %s171 = int_to_ptr.vmem [resolvable:$true] %s170
          %173 = dma.hbm_to_vmem [thread:$0]  %s168, 128, %s171, %s159
        $region28: #{mlp_output_forward.1} parent=23 // pred_fallthru
          _
      $region24: #{mlp_output_forward.1} parent=5 // pred_fallthru
        _
      %p174 = scmp.le.s32.totalorder 1, %s14
      %p175 = scmp.lt.s32.totalorder %s14, 3
      %p176 = pnand %p174, %p175
      %p177 = pneg %p176
      // Predicated region
      $region29: #{mlp_output_forward.1} parent=5 // pred_check
        _
      $region30: #{mlp_output_forward.1} parent=5 // pred_check_branch
        %179 = sbr.rel (%p176) target = $region32
      $region31: #{mlp_output_forward.1} parent=5 // pred_region
        %s180 = ssub.s32 %s14, 1
        %s181 = sand.u32 %s41, 1
        %s182 = scalar_lea.sflag [#allocation5], %s181
        %s183 = sand.u32 %s41, 1
        %s184 = smul.addr %s183, 8
        %s185 = scalar_lea.vmem [#allocation4], %s184
        // Predicated region
        $region33: #{mlp_output_forward.1} parent=31 // pred_check
          %p186 = pneg %p54
        $region34: #{mlp_output_forward.1} parent=31 // pred_check_branch
          %188 = sbr.rel (%p186) target = $region36
        $region35: #{mlp_output_forward.1} parent=31 // pred_region
          %189 = dma.done %s182, 128
        $region36: #{mlp_output_forward.1} parent=31 // pred_fallthru
          _
        %s190 = sand.u32 %s41, 1
        %s191 = scalar_lea.sflag [#allocation5], %s190
        %s192 = sand.u32 %s41, 1
        %s193 = smul.addr %s192, 8
        %s194 = scalar_lea.vmem [#allocation4], %s193
        %p195 = pneg %p54
        %p196 = pneg %p51
        %p197 = scmp.lt.s32.totalorder %s24, 0
        %s198 = scalar_select %p197, %s24, 0
        %s199 = scalar_lea.vmem %s1, %s198
        %p200 = pneg %p80
        %p201 = pneg %p77
        %p202 = pneg %p101
        %p203 = pneg %p98
        %p204 = pneg %p127
        %p205 = pneg %p124
        %p206 = scmp.lt.s32.totalorder %s23, 1
        %s207 = scalar_select %p206, %s23, 1
        %s208 = smul.addr %s207, 8
        %s209 = scalar_lea.vmem %s3, %s208
        %p210 = scmp.lt.s32.totalorder %s24, 0
        %s211 = scalar_select %p210, %s24, 0
        %s212 = scalar_lea.vmem %s1, %s211
        %p213 = scmp.lt.s32.totalorder %s23, 1
        %s214 = scalar_select %p213, %s23, 1
        %s215 = smul.addr %s214, 8
        %s216 = scalar_lea.vmem %s3, %s215
        %p217 = scmp.eq.s32.totalorder %s24, 0
        // Predicated region
        $region37: #{mlp_output_forward.1} parent=31 // pred_check
          %p218 = pneg %p217
        $region38: #{mlp_output_forward.1} parent=31 // pred_check_branch
          %220 = sbr.rel (%p218) target = $region40
        $region39: #{mlp_output_forward.1} parent=31 // pred_region
          %vm221 = vcmask 7168
          %222 = vst.msk [vmem:[#allocation2] sm:$0xff] %vm221, 0.0
        $region40: #{mlp_output_forward.1} parent=31 // pred_fallthru
          _
        %v223 = vld [vmem:[%s185] sm:$0xff]
        %v224 = vld [vmem:[%s212] sm:$0x1]
        %v226 = vlaneseq
        %v227 = vshrl.u32 %v226, 7
        %v228 = vsub.s32 0, %v227
        %v229 = vrot.slane %v224, %v228
        %v231 = vmul.f32 %v223, %v229
        %vm232 = vcmask 261120
        %v233 = vsel %vm232, %v231, 0.0
        %234 = vadd.xlane.f32.xlu0 %v233
        %v235 = vpop.xlane.xlu0 %234
        %v236 = vld [vmem:[#allocation2] sm:$0xff]
        %v237 = vadd.f32 %v236, %v235
        %vm238 = vcmask 7168
        %239 = vst.msk [vmem:[#allocation2] sm:$0xff] %vm238, %v237
        // Predicated region
        $region41: #{mlp_output_forward.1} parent=31 // pred_check
          %p240 = pneg %p217
        $region42: #{mlp_output_forward.1} parent=31 // pred_check_branch
          %242 = sbr.rel (%p240) target = $region44
        $region43: #{mlp_output_forward.1} parent=31 // pred_region
          %v243 = vld [vmem:[#allocation2] sm:$0xff]
          %v244 = vld [vmem:[#allocation3] sm:$0x1]
          %v246 = vlaneseq
          %v247 = vshrl.u32 %v246, 7
          %v248 = vsub.s32 0, %v247
          %v249 = vrot.slane %v244, %v248
          %v251 = vadd.f32 %v243, %v249
          %252 = vst.msk [vmem:[%s216] sm:$0xff] %vm238, %v251
        $region44: #{mlp_output_forward.1} parent=31 // pred_fallthru
          _
        %p253 = scmp.lt.s32.totalorder %s23, 1
        %s254 = scalar_select %p253, %s23, 1
        %s255 = smul.addr %s254, 8
        %s256 = scalar_lea.vmem %s3, %s255
        // Predicated region
        $region45: #{mlp_output_forward.1} parent=31 // pred_check
          %p257 = pneg %p124
        $region46: #{mlp_output_forward.1} parent=31 // pred_check_branch
          %259 = sbr.rel (%p257) target = $region48
        $region47: #{mlp_output_forward.1} parent=31 // pred_region
          _
        $region48: #{mlp_output_forward.1} parent=31 // pred_fallthru
          _
      $region32: #{mlp_output_forward.1} parent=5 // pred_fallthru
        _
      %p260 = scmp.le.s32.totalorder 2, %s14
      // Predicated region
      $region49: #{mlp_output_forward.1} parent=5 // pred_check
        %p261 = pneg %p260
      $region50: #{mlp_output_forward.1} parent=5 // pred_check_branch
        %263 = sbr.rel (%p261) target = $region52
      $region51: #{mlp_output_forward.1} parent=5 // pred_region
        %s264 = ssub.s32 %s14, 2
        // Predicated region
        $region53: #{mlp_output_forward.1} parent=51 // pred_check
          %p265 = pneg %p130
        $region54: #{mlp_output_forward.1} parent=51 // pred_check_branch
          %267 = sbr.rel (%p265) target = $region56
        $region55: #{mlp_output_forward.1} parent=51 // pred_region
          %p268 = scmp.lt.s32.totalorder %s25, 1
          %s269 = scalar_select %p268, %s25, 1
          %s270 = smul.addr %s269, 8
          %s271 = scalar_lea.vmem %s3, %s270
        $region56: #{mlp_output_forward.1} parent=51 // pred_fallthru
          _
      $region52: #{mlp_output_forward.1} parent=5 // pred_fallthru
        _
    $region6: #{mlp_output_forward.1} parent=1 // loop_footer
      %s18 = sadd.s32 1, %s14
    $region7: #{mlp_output_forward.1} parent=1 // loop_footer_branch
      %13 = sbr.rel target = $region3
    $region8: #{mlp_output_forward.1} parent=1 // loop_exit
      _
    %272 = vsyncpa [#allocation5], 1
    %s273 = scalar_lea.sflag [#allocation5], 1
    %274 = vsyncpa %s273, 1

</llo_original>
